<compile_context>
chip_gen: v7x
topology: tpu7x:2x2x1
jax: 0.10.0
libtpu: 0.0.40
codegen_flags: <defaults>
</compile_context>

<pallas_src>
import jax
import jax.numpy as jnp
from jax.experimental import pallas as pl
from jax.experimental.pallas import tpu as pltpu


_BB = 128  # batch tile (lanes per grid step)


def _lrelu(v):
    return jnp.where(v > 0, v, 0.2 * v)


def _discriminator_kernel(x_ref, lab_ref, w_ref, bp_ref, emb_ref, out_ref):
    # x_ref:   (W, BB)        f32   activations, batch on lanes (padded to W rows)
    # lab_ref: (2, BB)        i32   row0 = labels1, row1 = n_class1 + labels2
    # w_ref:   (3, W, W)      bf16  stacked [W1; W2; W3], PyTorch (out, in) layout
    # bp_ref:  (W, 5)         f32   cols: b1 | b2 | b3 | w4 | b4(broadcast)
    # emb_ref: (W, n1+n2)     bf16  block-diagonal [e1^T | 0 ; 0 | e2^T]
    # out_ref: (1, BB)        f32   logits, lane-dense
    _, BB = x_ref.shape
    n_total = emb_ref.shape[1]

    x = x_ref[...]
    lab = lab_ref[...]

    # --- fused factor-embedding gather: one two-hot matmul, no concatenate ---
    idx = jax.lax.broadcasted_iota(jnp.int32, (n_total, BB), 0)
    two_hot = ((idx == lab[0:1, :]) | (idx == lab[1:2, :])).astype(jnp.float32)
    femb = jnp.dot(emb_ref[...].astype(jnp.float32), two_hot,
                   preferred_element_type=jnp.float32)             # (W, BB)

    # --- inp2feature: 3 x (Linear -> LeakyReLU(0.2)), weights VMEM-resident ---
    h = _lrelu(jnp.dot(w_ref[0].astype(jnp.float32), x,
                       preferred_element_type=jnp.float32) + bp_ref[:, 0:1])
    h = _lrelu(jnp.dot(w_ref[1].astype(jnp.float32), h,
                       preferred_element_type=jnp.float32) + bp_ref[:, 1:2])
    feature = _lrelu(jnp.dot(w_ref[2].astype(jnp.float32), h,
                             preferred_element_type=jnp.float32) + bp_ref[:, 2:3])

    # --- feature2logits fused with interaction term (no N=1 MXU matmul) ---
    w4_col = bp_ref[:, 3:4]                                        # (W, 1)
    b4 = bp_ref[0:1, 4:5]                                          # (1, 1)
    out_ref[...] = (jnp.sum(feature * (w4_col + femb), axis=0, keepdims=True)
                    + b4)                                          # (1, BB)


def discriminator_forward(x, labels1, labels2, packed, n_class1):
    """x: (B, L) f32; labels1/labels2: (B,) int. Returns (B,) f32 logits."""
    wstack, bpack, emb_t = packed
    B, L = x.shape
    W = wstack.shape[-1]
    n_total = emb_t.shape[-1]

    num_tiles = pl.cdiv(B, _BB)
    PB = num_tiles * _BB

    # Layout plumbing only: batch on lanes, zero-padded rows/cols.
    x_t = jnp.zeros((W, PB), jnp.float32).at[:L, :B].set(x.astype(jnp.float32).T)
    lab = jnp.full((2, PB), n_total, jnp.int32)      # pad cols -> zero embedding
    lab = lab.at[0, :B].set(labels1.astype(jnp.int32))
    lab = lab.at[1, :B].set(labels2.astype(jnp.int32) + n_class1)

    flops = 2 * PB * W * (3 * W + n_total) + 4 * PB * W
    bytes_accessed = (x_t.size * 4 + lab.size * 4 + wstack.size * 2 +
                      bpack.size * 4 + emb_t.size * 2 + PB * 4)

    out = pl.pallas_call(
        _discriminator_kernel,
        out_shape=jax.ShapeDtypeStruct((1, PB), jnp.float32),
        grid=(num_tiles,),
        in_specs=[
            pl.BlockSpec((W, _BB), lambda i: (0, i)),        # x tiles (pipelined)
            pl.BlockSpec((2, _BB), lambda i: (0, i)),        # labels
            pl.BlockSpec((3, W, W), lambda i: (0, 0, 0)),    # weights (resident)
            pl.BlockSpec((W, 5), lambda i: (0, 0)),          # b1|b2|b3|w4|b4
            pl.BlockSpec((W, n_total), lambda i: (0, 0)),    # block-diag embeddings
        ],
        out_specs=pl.BlockSpec((1, _BB), lambda i: (0, i)),
        compiler_params=pltpu.CompilerParams(dimension_semantics=("parallel",)),
        cost_estimate=pl.CostEstimate(flops=flops, transcendentals=0,
                                      bytes_accessed=bytes_accessed),
    )(x_t, lab, wstack, bpack, emb_t)
    return out[0, :B]


def _spectral_normalize(w):
    # eval-mode SN: divide weight by its largest singular value (setup-time).
    return w / jnp.linalg.norm(w, ord=2)


def make_params(key, n_class1, n_class2, factor_emb_size, latent_size):
    """Raw parameters in PyTorch layout: Linear weight = (out, in)."""
    F2 = factor_emb_size * 2
    ks = jax.random.split(key, 10)
    init = lambda k, shape, s: (s * jax.random.normal(k, shape)).astype(jnp.float32)
    w1 = _spectral_normalize(init(ks[0], (latent_size, latent_size), 0.2))
    b1 = init(ks[1], (latent_size,), 0.1)
    w2 = _spectral_normalize(init(ks[2], (F2, latent_size), 0.2))
    b2 = init(ks[3], (F2,), 0.1)
    w3 = _spectral_normalize(init(ks[4], (F2, F2), 0.2))
    b3 = init(ks[5], (F2,), 0.1)
    w4 = _spectral_normalize(init(ks[6], (1, F2), 0.2))
    b4 = init(ks[7], (1,), 0.1)
    e1 = _spectral_normalize(init(ks[8], (n_class1, factor_emb_size), 0.5))
    e2 = _spectral_normalize(init(ks[9], (n_class2, factor_emb_size), 0.5))
    return (e1, e2, w1, b1, w2, b2, w3, b3, w4, b4)


def pack_params(params, n_class1, n_class2, factor_emb_size, latent_size):
    """Pack 13 operands into 3 kernel arrays (weights/embeddings in bf16)."""
    (e1, e2, w1, b1, w2, b2, w3, b3, w4, b4) = params
    F = factor_emb_size
    F2 = 2 * F
    L = latent_size
    W = max(L, F2)

    wstack = jnp.zeros((3, W, W), jnp.float32)
    wstack = wstack.at[0, :L, :L].set(w1)
    wstack = wstack.at[1, :F2, :L].set(w2)
    wstack = wstack.at[2, :F2, :F2].set(w3)
    wstack = wstack.astype(jnp.bfloat16)

    bpack = jnp.zeros((W, 5), jnp.float32)
    bpack = bpack.at[:L, 0].set(b1)
    bpack = bpack.at[:F2, 1].set(b2)
    bpack = bpack.at[:F2, 2].set(b3)
    bpack = bpack.at[:F2, 3].set(w4[0])
    bpack = bpack.at[:, 4].set(b4[0])

    n_total = n_class1 + n_class2
    emb_t = jnp.zeros((W, n_total), jnp.float32)
    emb_t = emb_t.at[:F, :n_class1].set(e1.T)
    emb_t = emb_t.at[F:F2, n_class1:].set(e2.T)
    emb_t = emb_t.astype(jnp.bfloat16)

    return wstack, bpack, emb_t


def reference_forward(x, labels1, labels2, packed, n_class1,
                      factor_emb_size, latent_size):
    """Pure-JAX reference using the same (bf16-rounded) weights as the kernel."""
    wstack, bpack, emb_t = (a.astype(jnp.float32) for a in packed)
    F = factor_emb_size
    F2 = 2 * F
    L = latent_size
    w1 = wstack[0, :L, :L]
    w2 = wstack[1, :F2, :L]
    w3 = wstack[2, :F2, :F2]
    b1, b2, b3 = bpack[:L, 0], bpack[:F2, 1], bpack[:F2, 2]
    w4, b4 = bpack[:F2, 3], bpack[0, 4]
    e1 = emb_t[:F, :n_class1].T
    e2 = emb_t[F:F2, n_class1:].T
    hp = jax.lax.Precision.HIGHEST
    lrelu = lambda v: jnp.where(v > 0, v, 0.2 * v)
    h = lrelu(jnp.dot(x, w1.T, precision=hp) + b1)
    h = lrelu(jnp.dot(h, w2.T, precision=hp) + b2)
    feature = lrelu(jnp.dot(h, w3.T, precision=hp) + b3)
    femb = jnp.concatenate([e1[labels1], e2[labels2]], axis=1)
    logits0 = jnp.dot(feature, w4, precision=hp) + b4
    return logits0 + jnp.sum(feature * femb, axis=1)


if __name__ == "__main__":
    n_class1, n_class2 = 4, 5
    factor_emb_size = 16
    latent_size = 32
    B = 2

    key = jax.random.PRNGKey(0)
    kx, kl1, kl2, kp = jax.random.split(key, 4)
    x = jax.random.normal(kx, (B, latent_size), dtype=jnp.float32)
    labels1 = jax.random.randint(kl1, (B,), 0, n_class1, dtype=jnp.int32)
    labels2 = jax.random.randint(kl2, (B,), 0, n_class2, dtype=jnp.int32)

    params = make_params(kp, n_class1, n_class2, factor_emb_size, latent_size)
    packed = pack_params(params, n_class1, n_class2, factor_emb_size, latent_size)

    logits = discriminator_forward(x, labels1, labels2, packed, n_class1)
    jax.block_until_ready(logits)

    ref = reference_forward(x, labels1, labels2, packed, n_class1,
                            factor_emb_size, latent_size)
    assert logits.shape == (B,)
    assert jnp.allclose(logits, ref, atol=2e-3, rtol=2e-3), (logits, ref)
    print("KERNEL_OK")
</pallas_src>

<mosaic_0001>
module attributes {stable_mosaic.version = 11 : i64} {
  func.func @_discriminator_kernel(%arg0: i32, %arg1: memref<32x128xf32, #tpu.memory_space<vmem>>, %arg2: memref<2x128xi32, #tpu.memory_space<vmem>>, %arg3: memref<3x32x32xbf16, #tpu.memory_space<vmem>>, %arg4: memref<32x5xf32, #tpu.memory_space<vmem>>, %arg5: memref<32x9xbf16, #tpu.memory_space<vmem>>, %arg6: memref<1x128xf32, #tpu.memory_space<vmem>>) attributes {dimension_semantics = [#tpu.dimension_semantics<parallel>], iteration_bounds = array<i64: 1>, scalar_prefetch = 0 : i64, scratch_operands = 0 : i64, tpu.core_type = #tpu.core_type<tc>, window_params = [{transform_indices = @transform_0, window_bounds = array<i64: 32, 128>}, {transform_indices = @transform_1, window_bounds = array<i64: 2, 128>}, {pipeline_mode = #tpu.pipeline_mode<synchronous>, transform_indices = @transform_2, window_bounds = array<i64: 3, 32, 32>}, {pipeline_mode = #tpu.pipeline_mode<synchronous>, transform_indices = @transform_3, window_bounds = array<i64: 32, 5>}, {pipeline_mode = #tpu.pipeline_mode<synchronous>, transform_indices = @transform_4, window_bounds = array<i64: 32, 9>}, {transform_indices = @transform_5, window_bounds = array<i64: 1, 128>}]} {
    %c0 = arith.constant 0 : index
    %c0_0 = arith.constant 0 : index
    %0 = vector.load %arg1[%c0, %c0_0] : memref<32x128xf32, #tpu.memory_space<vmem>>, vector<32x128xf32>
    %c0_1 = arith.constant 0 : index
    %c0_2 = arith.constant 0 : index
    %1 = vector.load %arg2[%c0_1, %c0_2] : memref<2x128xi32, #tpu.memory_space<vmem>>, vector<2x128xi32>
    %2 = tpu.iota {dimensions = array<i32: 0>} : vector<9x128xi32>
    %3 = vector.extract_strided_slice %1 {offsets = [0, 0], sizes = [1, 128], strides = [1, 1]} : vector<2x128xi32> to vector<1x128xi32>
    %4 = vector.broadcast %3 : vector<1x128xi32> to vector<9x128xi32>
    %5 = arith.cmpi eq, %2, %4 : vector<9x128xi32>
    %6 = vector.extract_strided_slice %1 {offsets = [1, 0], sizes = [1, 128], strides = [1, 1]} : vector<2x128xi32> to vector<1x128xi32>
    %7 = vector.broadcast %6 : vector<1x128xi32> to vector<9x128xi32>
    %8 = arith.cmpi eq, %2, %7 : vector<9x128xi32>
    %9 = arith.ori %5, %8 : vector<9x128xi1>
    %10 = arith.extui %9 : vector<9x128xi1> to vector<9x128xi32>
    %11 = arith.sitofp %10 : vector<9x128xi32> to vector<9x128xf32>
    %c0_3 = arith.constant 0 : index
    %c0_4 = arith.constant 0 : index
    %12 = vector.load %arg5[%c0_3, %c0_4] : memref<32x9xbf16, #tpu.memory_space<vmem>>, vector<32x9xbf16>
    %13 = arith.extf %12 : vector<32x9xbf16> to vector<32x9xf32>
    %cst = arith.constant dense<0.000000e+00> : vector<32x128xf32>
    %14 = tpu.matmul %13, %11, %cst {dimension_numbers = #tpu.dot_dimension_numbers<[1], [0], [0], [1], [0, 0, 1, 1], [], []>} : vector<32x9xf32>, vector<9x128xf32>, vector<32x128xf32> -> vector<32x128xf32>
    %c0_5 = arith.constant 0 : index
    %c0_6 = arith.constant 0 : index
    %c0_7 = arith.constant 0 : index
    %15 = vector.load %arg3[%c0_5, %c0_6, %c0_7] : memref<3x32x32xbf16, #tpu.memory_space<vmem>>, vector<1x32x32xbf16>
    %16 = vector.shape_cast %15 : vector<1x32x32xbf16> to vector<32x32xbf16>
    %17 = arith.extf %16 : vector<32x32xbf16> to vector<32x32xf32>
    %cst_8 = arith.constant dense<0.000000e+00> : vector<32x128xf32>
    %18 = tpu.matmul %17, %0, %cst_8 {dimension_numbers = #tpu.dot_dimension_numbers<[1], [0], [0], [1], [0, 0, 1, 1], [], []>} : vector<32x32xf32>, vector<32x128xf32>, vector<32x128xf32> -> vector<32x128xf32>
    %c0_9 = arith.constant 0 : index
    %c0_10 = arith.constant 0 : index
    %19 = vector.load %arg4[%c0_9, %c0_10] : memref<32x5xf32, #tpu.memory_space<vmem>>, vector<32x1xf32>
    %20 = vector.broadcast %19 : vector<32x1xf32> to vector<32x128xf32>
    %21 = arith.addf %18, %20 : vector<32x128xf32>
    %cst_11 = arith.constant 0.000000e+00 : f32
    %22 = vector.broadcast %cst_11 : f32 to vector<32x128xf32>
    %23 = arith.cmpf ogt, %21, %22 : vector<32x128xf32>
    %cst_12 = arith.constant 2.000000e-01 : f32
    %24 = vector.broadcast %cst_12 : f32 to vector<32x128xf32>
    %25 = arith.mulf %24, %21 : vector<32x128xf32>
    %26 = arith.select %23, %21, %25 : vector<32x128xi1>, vector<32x128xf32>
    %c1 = arith.constant 1 : index
    %c0_13 = arith.constant 0 : index
    %c0_14 = arith.constant 0 : index
    %27 = vector.load %arg3[%c1, %c0_13, %c0_14] : memref<3x32x32xbf16, #tpu.memory_space<vmem>>, vector<1x32x32xbf16>
    %28 = vector.shape_cast %27 : vector<1x32x32xbf16> to vector<32x32xbf16>
    %29 = arith.extf %28 : vector<32x32xbf16> to vector<32x32xf32>
    %cst_15 = arith.constant dense<0.000000e+00> : vector<32x128xf32>
    %30 = tpu.matmul %29, %26, %cst_15 {dimension_numbers = #tpu.dot_dimension_numbers<[1], [0], [0], [1], [0, 0, 1, 1], [], []>} : vector<32x32xf32>, vector<32x128xf32>, vector<32x128xf32> -> vector<32x128xf32>
    %c0_16 = arith.constant 0 : index
    %c1_17 = arith.constant 1 : index
    %31 = vector.load %arg4[%c0_16, %c1_17] : memref<32x5xf32, #tpu.memory_space<vmem>>, vector<32x1xf32>
    %32 = vector.broadcast %31 : vector<32x1xf32> to vector<32x128xf32>
    %33 = arith.addf %30, %32 : vector<32x128xf32>
    %cst_18 = arith.constant 0.000000e+00 : f32
    %34 = vector.broadcast %cst_18 : f32 to vector<32x128xf32>
    %35 = arith.cmpf ogt, %33, %34 : vector<32x128xf32>
    %cst_19 = arith.constant 2.000000e-01 : f32
    %36 = vector.broadcast %cst_19 : f32 to vector<32x128xf32>
    %37 = arith.mulf %36, %33 : vector<32x128xf32>
    %38 = arith.select %35, %33, %37 : vector<32x128xi1>, vector<32x128xf32>
    %c2 = arith.constant 2 : index
    %c0_20 = arith.constant 0 : index
    %c0_21 = arith.constant 0 : index
    %39 = vector.load %arg3[%c2, %c0_20, %c0_21] : memref<3x32x32xbf16, #tpu.memory_space<vmem>>, vector<1x32x32xbf16>
    %40 = vector.shape_cast %39 : vector<1x32x32xbf16> to vector<32x32xbf16>
    %41 = arith.extf %40 : vector<32x32xbf16> to vector<32x32xf32>
    %cst_22 = arith.constant dense<0.000000e+00> : vector<32x128xf32>
    %42 = tpu.matmul %41, %38, %cst_22 {dimension_numbers = #tpu.dot_dimension_numbers<[1], [0], [0], [1], [0, 0, 1, 1], [], []>} : vector<32x32xf32>, vector<32x128xf32>, vector<32x128xf32> -> vector<32x128xf32>
    %c0_23 = arith.constant 0 : index
    %c2_24 = arith.constant 2 : index
    %43 = vector.load %arg4[%c0_23, %c2_24] : memref<32x5xf32, #tpu.memory_space<vmem>>, vector<32x1xf32>
    %44 = vector.broadcast %43 : vector<32x1xf32> to vector<32x128xf32>
    %45 = arith.addf %42, %44 : vector<32x128xf32>
    %cst_25 = arith.constant 0.000000e+00 : f32
    %46 = vector.broadcast %cst_25 : f32 to vector<32x128xf32>
    %47 = arith.cmpf ogt, %45, %46 : vector<32x128xf32>
    %cst_26 = arith.constant 2.000000e-01 : f32
    %48 = vector.broadcast %cst_26 : f32 to vector<32x128xf32>
    %49 = arith.mulf %48, %45 : vector<32x128xf32>
    %50 = arith.select %47, %45, %49 : vector<32x128xi1>, vector<32x128xf32>
    %c0_27 = arith.constant 0 : index
    %c3 = arith.constant 3 : index
    %51 = vector.load %arg4[%c0_27, %c3] : memref<32x5xf32, #tpu.memory_space<vmem>>, vector<32x1xf32>
    %c0_28 = arith.constant 0 : index
    %c4 = arith.constant 4 : index
    %52 = vector.load %arg4[%c0_28, %c4] : memref<32x5xf32, #tpu.memory_space<vmem>>, vector<1x1xf32>
    %53 = vector.broadcast %51 : vector<32x1xf32> to vector<32x128xf32>
    %54 = arith.addf %53, %14 : vector<32x128xf32>
    %55 = arith.mulf %50, %54 : vector<32x128xf32>
    %cst_29 = arith.constant dense<0.000000e+00> : vector<128xf32>
    %56 = vector.multi_reduction <add>, %55, %cst_29 [0] : vector<32x128xf32> to vector<128xf32>
    %57 = vector.shape_cast %56 : vector<128xf32> to vector<1x128xf32>
    %58 = vector.broadcast %52 : vector<1x1xf32> to vector<1x128xf32>
    %59 = arith.addf %57, %58 : vector<1x128xf32>
    %c0_30 = arith.constant 0 : index
    %c0_31 = arith.constant 0 : index
    %60 = vector.load %arg6[%c0_30, %c0_31] : memref<1x128xf32, #tpu.memory_space<vmem>>, vector<1x128xf32>
    tpu.vector_store %arg6[%c0_30, %c0_31], %59 {strides = array<i32>} : memref<1x128xf32, #tpu.memory_space<vmem>>, vector<1x128xf32>,
    return
  }
  func.func @transform_0(%arg0: i32) -> (i32, i32) {
    %c0_i32 = arith.constant 0 : i32
    %c0_i32_0 = arith.constant 0 : i32
    return %c0_i32, %arg0 : i32, i32
  }
  func.func @transform_1(%arg0: i32) -> (i32, i32) {
    %c0_i32 = arith.constant 0 : i32
    %c0_i32_0 = arith.constant 0 : i32
    return %c0_i32, %arg0 : i32, i32
  }
  func.func @transform_2(%arg0: i32) -> (i32, i32, i32) {
    %c0_i32 = arith.constant 0 : i32
    %c0_i32_0 = arith.constant 0 : i32
    %c0_i32_1 = arith.constant 0 : i32
    %c0_i32_2 = arith.constant 0 : i32
    return %c0_i32, %c0_i32_0, %c0_i32_1 : i32, i32, i32
  }
  func.func @transform_3(%arg0: i32) -> (i32, i32) {
    %c0_i32 = arith.constant 0 : i32
    %c0_i32_0 = arith.constant 0 : i32
    %c0_i32_1 = arith.constant 0 : i32
    return %c0_i32, %c0_i32_0 : i32, i32
  }
  func.func @transform_4(%arg0: i32) -> (i32, i32) {
    %c0_i32 = arith.constant 0 : i32
    %c0_i32_0 = arith.constant 0 : i32
    %c0_i32_1 = arith.constant 0 : i32
    return %c0_i32, %c0_i32_0 : i32, i32
  }
  func.func @transform_5(%arg0: i32) -> (i32, i32) {
    %c0_i32 = arith.constant 0 : i32
    %c0_i32_0 = arith.constant 0 : i32
    return %c0_i32, %arg0 : i32, i32
  }
}

</mosaic_0001>

<llo_original>
// kernel: tpu_custom_call.1
$region0: #{tpu_custom_call.1}
  #allocation0 [shape = 'u32[]', space=smem, size = 0x4, offset = 0x4, fixed_abs, tag = 'smem constant byte address 0x4 - core index']
  #allocation1 [shape = 'u32[144,128]{1,0:T(1,128)}', space=vmem, size = 0x12000, scoped, tag = 'internal scratch']
  %s0 = inlined_call_operand.hbm [shape: f32[32,128], index: 0, kind: input, shape index: {}]
  %s1 = inlined_call_operand.vmem [shape: s32[2,128], index: 1, kind: input, shape index: {}]
  %s2 = inlined_call_operand.vmem [shape: bf16[3,32,32], index: 2, kind: input, shape index: {}]
  %s3 = inlined_call_operand.vmem [shape: f32[32,5], index: 3, kind: input, shape index: {}]
  %s4 = inlined_call_operand.vmem [shape: bf16[32,9], index: 4, kind: input, shape index: {}]
  %s5 = inlined_call_operand.hbm [shape: f32[1,128], index: 5, kind: output, shape index: {}]
  %s6 = sld [smem:[#allocation0]]
  $region34: #{tpu_custom_call.1} parent=0
    _
  %s8 = ssub.s32 1, %s6
  %s9 = scalar_select 0, %s8, %s6
  $region1: #{tpu_custom_call.1} parent=0
    #allocation2 [shape = 'u8[16384]{0}', space=vmem, size = 0x4000, scoped, tag = 'input window, operand 0, single buffered']
    #allocation3 [shape = 's32[1]{0}', space=sflag, size = 0x4, scoped, tag = 'scoped memory for tpu_custom_call.1']
    #allocation4 [shape = 's32[1]{0}', space=sflag, size = 0x4, scoped, tag = 'scoped memory for tpu_custom_call.1']
    #allocation5 [shape = 'u8[512]{0}', space=vmem, size = 0x400, scoped, tag = 'output window, operand 0, single buffered']
    %10 = vsyncpa [#allocation3], 0
    %11 = vsyncpa [#allocation4], 0
    // Predicated region
    $region2: #{tpu_custom_call.1} parent=1 // pred_check
      _
    $region3: #{tpu_custom_call.1} parent=1 // pred_check_branch
      %13 = sbr.rel (0) target = $region5
    $region4: #{tpu_custom_call.1} parent=1 // pred_region
      %s15 = ssub.s32 512, 512
      %16 = vsyncadd [#allocation3], %s15
      %s17 = sshll.u32 [#allocation2], 4
      %s18 = int_to_ptr.vmem [resolvable:$true] %s17
      %23 = dma.hbm_to_vmem [thread:$0]  %s0, 512, %s18, [#allocation3], 128, 128, 8
    $region5: #{tpu_custom_call.1} parent=1 // pred_fallthru
      _
    // Predicated region
    $region6: #{tpu_custom_call.1} parent=1 // pred_check
      _
    $region7: #{tpu_custom_call.1} parent=1 // pred_check_branch
      %25 = sbr.rel (0) target = $region9
    $region8: #{tpu_custom_call.1} parent=1 // pred_region
      _
    $region9: #{tpu_custom_call.1} parent=1 // pred_fallthru
      _
    // Predicated region
    $region10: #{tpu_custom_call.1} parent=1 // pred_check
      _
    $region11: #{tpu_custom_call.1} parent=1 // pred_check_branch
      %27 = sbr.rel (0) target = $region13
    $region12: #{tpu_custom_call.1} parent=1 // pred_region
      _
    $region13: #{tpu_custom_call.1} parent=1 // pred_fallthru
      _
    // Predicated region
    $region14: #{tpu_custom_call.1} parent=1 // pred_check
      _
    $region15: #{tpu_custom_call.1} parent=1 // pred_check_branch
      %29 = sbr.rel (0) target = $region17
    $region16: #{tpu_custom_call.1} parent=1 // pred_region
      _
    $region17: #{tpu_custom_call.1} parent=1 // pred_fallthru
      _
    // Predicated region
    $region18: #{tpu_custom_call.1} parent=1 // pred_check
      _
    $region19: #{tpu_custom_call.1} parent=1 // pred_check_branch
      %31 = sbr.rel (0) target = $region21
    $region20: #{tpu_custom_call.1} parent=1 // pred_region
      _
    $region21: #{tpu_custom_call.1} parent=1 // pred_fallthru
      _
    // Predicated region
    $region22: #{tpu_custom_call.1} parent=1 // pred_check
      _
    $region23: #{tpu_custom_call.1} parent=1 // pred_check_branch
      %33 = sbr.rel (0) target = $region25
    $region24: #{tpu_custom_call.1} parent=1 // pred_region
      %34 = dma.done [#allocation3], 512
    $region25: #{tpu_custom_call.1} parent=1 // pred_fallthru
      _
    %v35 = vld [vmem:[#allocation2] sm:$0xff]
    %v36 = vld [vmem:[#allocation2 + $0x8] sm:$0xff]
    %v37 = vld [vmem:[#allocation2 + $0x10] sm:$0xff]
    %v38 = vld [vmem:[#allocation2 + $0x18] sm:$0xff]
    %v39 = vld [vmem:[%s1] sm:$0x3]
    %v40 = vlaneseq
    %v41 = vshrl.u32 %v40, 7
    %v42 = vadd.s32 %v41, 8
    %v43 = vlaneseq
    %v44 = vshrl.u32 %v43, 7
    %v45 = vsub.s32 0, %v44
    %v46 = vrot.slane %v39, %v45
    %vm47 = vcmp.eq.s32.totalorder %v41, %v46
    %vm48 = vcmp.eq.s32.totalorder %v42, %v46
    %v49 = vlaneseq
    %v50 = vshrl.u32 %v49, 7
    %v51 = vsub.s32 1, %v50
    %v52 = vrot.slane %v39, %v51
    %vm53 = vcmp.eq.s32.totalorder %v41, %v52
    %vm54 = vcmp.eq.s32.totalorder %v42, %v52
    %vm55 = vmor %vm47, %vm53
    %vm56 = vmor %vm48, %vm54
    %v57 = vsel %vm55, 1, 0
    %v58 = vsel %vm56, 1, 0
    %v59 = vcvt.s32.f32 %v57
    %v60 = vcvt.s32.f32 %v58
    %v61 = vld [vmem:[%s4] sm:$0xf]
    %v62 = vld [vmem:[%s4 + $0x4] sm:$0xf]
    %v63 = vld [vmem:[%s4 + $0x8] sm:$0xf]
    %v64 = vld [vmem:[%s4 + $0xc] sm:$0xf]
    %v65 = vunpack.c.l.bf16 %v61
    %v66 = vunpack.c.l.bf16 %v62
    %v67 = vunpack.c.l.bf16 %v63
    %v68 = vunpack.c.l.bf16 %v64
    %vm69 = vcmask 72704
    %v71 = vsel %vm69, %v65, 0
    %v74 = vsel %vm69, %v66, 0
    %v77 = vsel %vm69, %v67, 0
    %v80 = vsel %vm69, %v68, 0
    %vm82 = vcmask 1040384
    %v84 = vsel %vm82, %v60, 0
    %86 = vmatprep.subr.mxu0 0.0
    %87 = vmatpush1.msra.mxu0 %v59
    %88 = vmatprep.subr.mxu0 0.0
    %89 = vmatpush1.msra.mxu0 %v84
    %90 = vmatprep.subr.mxu0 0.0
    %91 = vmatpush1.msra.mxu0 0.0
    %92 = vmatprep.subr.mxu0 0.0
    %93 = vmatpush1.msra.mxu0 0.0
    %94 = vmatprep.subr.mxu0 0.0
    %95 = vmatpush1.msra.mxu0 0.0
    %96 = vmatprep.subr.mxu0 0.0
    %97 = vmatpush1.msra.mxu0 0.0
    %98 = vmatprep.subr.mxu0 0.0
    %99 = vmatpush1.msra.mxu0 0.0
    %100 = vmatprep.subr.mxu0 0.0
    %101 = vmatpush1.msra.mxu0 0.0
    %102 = vmatprep.subr.mxu0 0.0
    %103 = vmatpush1.msra.mxu0 0.0
    %104 = vmatprep.subr.mxu0 0.0
    %105 = vmatpush1.msra.mxu0 0.0
    %106 = vmatprep.subr.mxu0 0.0
    %107 = vmatpush1.msra.mxu0 0.0
    %108 = vmatprep.subr.mxu0 0.0
    %109 = vmatpush1.msra.mxu0 0.0
    %110 = vmatprep.subr.mxu0 0.0
    %111 = vmatpush1.msra.mxu0 0.0
    %112 = vmatprep.subr.mxu0 0.0
    %113 = vmatpush1.msra.mxu0 0.0
    %114 = vmatprep.subr.mxu0 0.0
    %115 = vmatpush1.msra.mxu0 0.0
    %116 = vmatprep.subr.mxu0 0.0
    %117 = vmatpush1.msra.mxu0 0.0
    %118 = vmatprep.subr.mxu0 0.0
    %119 = vmatpush1.msra.mxu0 0.0
    %120 = vmatprep.subr.mxu0 0.0
    %121 = vmatpush1.msra.mxu0 0.0
    %122 = vmatprep.subr.mxu0 0.0
    %123 = vmatpush1.msra.mxu0 0.0
    %124 = vmatprep.subr.mxu0 0.0
    %125 = vmatpush1.msra.mxu0 0.0
    %126 = vmatprep.subr.mxu0 0.0
    %127 = vmatpush1.msra.mxu0 0.0
    %128 = vmatprep.subr.mxu0 0.0
    %129 = vmatpush1.msra.mxu0 0.0
    %130 = vmatprep.subr.mxu0 0.0
    %131 = vmatpush1.msra.mxu0 0.0
    %132 = vmatprep.subr.mxu0 0.0
    %133 = vmatpush1.msra.mxu0 0.0
    %134 = vmatprep.subr.mxu0 0.0
    %135 = vmatpush1.msra.mxu0 0.0
    %136 = vmatprep.subr.mxu0 0.0
    %137 = vmatpush1.msra.mxu0 0.0
    %138 = vmatprep.subr.mxu0 0.0
    %139 = vmatpush1.msra.mxu0 0.0
    %140 = vmatprep.subr.mxu0 0.0
    %141 = vmatpush1.msra.mxu0 0.0
    %142 = vmatprep.subr.mxu0 0.0
    %143 = vmatpush1.msra.mxu0 0.0
    %144 = vmatprep.subr.mxu0 0.0
    %145 = vmatpush1.msra.mxu0 0.0
    %146 = vmatprep.subr.mxu0 0.0
    %147 = vmatpush1.msra.mxu0 0.0
    %148 = vmatprep.subr.mxu0 0.0
    %149 = vmatpush1.msra.mxu0 0.0
    %150 = vmatprep.mubr.f32.mxu0 0.0
    %151 = vmatmul.mubr.f32.gmra.mrb[0].mxu0 %v71
    %v152 = vpop.f32.mrb[0].mxu0
    %v153 = vadd.f32 0.0, %v152
    %v154 = vpop.f32.mrb[0].mxu0
    %155 = vmatprep.mubr.f32.mxu0 0.0
    %156 = vmatmul.mubr.f32.gmra.mrb[0].mxu0 %v74
    %v157 = vpop.f32.mrb[0].mxu0
    %v158 = vadd.f32 0.0, %v157
    %v159 = vpop.f32.mrb[0].mxu0
    %160 = vmatprep.mubr.f32.mxu0 0.0
    %161 = vmatmul.mubr.f32.gmra.mrb[0].mxu0 %v77
    %v162 = vpop.f32.mrb[0].mxu0
    %v163 = vadd.f32 0.0, %v162
    %v164 = vpop.f32.mrb[0].mxu0
    %165 = vmatprep.mubr.f32.mxu0 0.0
    %166 = vmatmul.mubr.f32.gmra.mrb[0].mxu0 %v80
    %v167 = vpop.f32.mrb[0].mxu0
    %v168 = vadd.f32 0.0, %v167
    %v169 = vpop.f32.mrb[0].mxu0
    %170 = vdwg.mxu0
    %v171 = vld [vmem:[%s2] sm:$0xf]
    %v172 = vld [vmem:[%s2 + $0x4] sm:$0xf]
    %v173 = vld [vmem:[%s2 + $0x8] sm:$0xf]
    %v174 = vld [vmem:[%s2 + $0xc] sm:$0xf]
    %v175 = vunpack.c.l.bf16 %v171
    %v176 = vunpack.c.l.bf16 %v172
    %v177 = vunpack.c.l.bf16 %v173
    %v178 = vunpack.c.l.bf16 %v174
    %v179 = vld [vmem:[%s3] sm:$0xff]
    %v180 = vld [vmem:[%s3 + $0x8] sm:$0xff]
    %v181 = vld [vmem:[%s3 + $0x10] sm:$0xff]
    %v182 = vld [vmem:[%s3 + $0x18] sm:$0xff]
    %184 = vset.pattern.permute.xlu0 0
    %185 = vperm.xlu0 %184, %v179
    %v186 = vpop.permute.xlu0 %185
    %189 = vset.pattern.permute.xlu0 0
    %190 = vperm.xlu0 %189, %v180
    %v191 = vpop.permute.xlu0 %190
    %194 = vset.pattern.permute.xlu0 0
    %195 = vperm.xlu0 %194, %v181
    %v196 = vpop.permute.xlu0 %195
    %199 = vset.pattern.permute.xlu0 0
    %200 = vperm.xlu0 %199, %v182
    %v201 = vpop.permute.xlu0 %200
    %vm203 = vcmask 261120
    %v205 = vsel %vm203, %v175, 0
    %v208 = vsel %vm203, %v176, 0
    %v211 = vsel %vm203, %v177, 0
    %v214 = vsel %vm203, %v178, 0
    %216 = vmatprep.subr.mxu0 0.0
    %217 = vmatpush1.msra.mxu0 %v35
    %218 = vmatprep.subr.mxu0 0.0
    %219 = vmatpush1.msra.mxu0 %v36
    %220 = vmatprep.subr.mxu0 0.0
    %221 = vmatpush1.msra.mxu0 %v37
    %222 = vmatprep.subr.mxu0 0.0
    %223 = vmatpush1.msra.mxu0 %v38
    %224 = vmatprep.subr.mxu0 0.0
    %225 = vmatpush1.msra.mxu0 0.0
    %226 = vmatprep.subr.mxu0 0.0
    %227 = vmatpush1.msra.mxu0 0.0
    %228 = vmatprep.subr.mxu0 0.0
    %229 = vmatpush1.msra.mxu0 0.0
    %230 = vmatprep.subr.mxu0 0.0
    %231 = vmatpush1.msra.mxu0 0.0
    %232 = vmatprep.subr.mxu0 0.0
    %233 = vmatpush1.msra.mxu0 0.0
    %234 = vmatprep.subr.mxu0 0.0
    %235 = vmatpush1.msra.mxu0 0.0
    %236 = vmatprep.subr.mxu0 0.0
    %237 = vmatpush1.msra.mxu0 0.0
    %238 = vmatprep.subr.mxu0 0.0
    %239 = vmatpush1.msra.mxu0 0.0
    %240 = vmatprep.subr.mxu0 0.0
    %241 = vmatpush1.msra.mxu0 0.0
    %242 = vmatprep.subr.mxu0 0.0
    %243 = vmatpush1.msra.mxu0 0.0
    %244 = vmatprep.subr.mxu0 0.0
    %245 = vmatpush1.msra.mxu0 0.0
    %246 = vmatprep.subr.mxu0 0.0
    %247 = vmatpush1.msra.mxu0 0.0
    %248 = vmatprep.subr.mxu0 0.0
    %249 = vmatpush1.msra.mxu0 0.0
    %250 = vmatprep.subr.mxu0 0.0
    %251 = vmatpush1.msra.mxu0 0.0
    %252 = vmatprep.subr.mxu0 0.0
    %253 = vmatpush1.msra.mxu0 0.0
    %254 = vmatprep.subr.mxu0 0.0
    %255 = vmatpush1.msra.mxu0 0.0
    %256 = vmatprep.subr.mxu0 0.0
    %257 = vmatpush1.msra.mxu0 0.0
    %258 = vmatprep.subr.mxu0 0.0
    %259 = vmatpush1.msra.mxu0 0.0
    %260 = vmatprep.subr.mxu0 0.0
    %261 = vmatpush1.msra.mxu0 0.0
    %262 = vmatprep.subr.mxu0 0.0
    %263 = vmatpush1.msra.mxu0 0.0
    %264 = vmatprep.subr.mxu0 0.0
    %265 = vmatpush1.msra.mxu0 0.0
    %266 = vmatprep.subr.mxu0 0.0
    %267 = vmatpush1.msra.mxu0 0.0
    %268 = vmatprep.subr.mxu0 0.0
    %269 = vmatpush1.msra.mxu0 0.0
    %270 = vmatprep.subr.mxu0 0.0
    %271 = vmatpush1.msra.mxu0 0.0
    %272 = vmatprep.subr.mxu0 0.0
    %273 = vmatpush1.msra.mxu0 0.0
    %274 = vmatprep.subr.mxu0 0.0
    %275 = vmatpush1.msra.mxu0 0.0
    %276 = vmatprep.subr.mxu0 0.0
    %277 = vmatpush1.msra.mxu0 0.0
    %278 = vmatprep.subr.mxu0 0.0
    %279 = vmatpush1.msra.mxu0 0.0
    %280 = vmatprep.mubr.f32.mxu0 0.0
    %281 = vmatmul.mubr.f32.gmra.mrb[0].mxu0 %v205
    %v282 = vpop.f32.mrb[0].mxu0
    %v283 = vadd.f32 %v186, %v282
    %v284 = vpop.f32.mrb[0].mxu0
    %285 = vmatprep.mubr.f32.mxu0 0.0
    %286 = vmatmul.mubr.f32.gmra.mrb[0].mxu0 %v208
    %v287 = vpop.f32.mrb[0].mxu0
    %v288 = vadd.f32 %v191, %v287
    %v289 = vpop.f32.mrb[0].mxu0
    %290 = vmatprep.mubr.f32.mxu0 0.0
    %291 = vmatmul.mubr.f32.gmra.mrb[0].mxu0 %v211
    %v292 = vpop.f32.mrb[0].mxu0
    %v293 = vadd.f32 %v196, %v292
    %v294 = vpop.f32.mrb[0].mxu0
    %295 = vmatprep.mubr.f32.mxu0 0.0
    %296 = vmatmul.mubr.f32.gmra.mrb[0].mxu0 %v214
    %v297 = vpop.f32.mrb[0].mxu0
    %v298 = vadd.f32 %v201, %v297
    %v299 = vpop.f32.mrb[0].mxu0
    %300 = vdwg.mxu0
    %vm301 = vcmp.gt.f32.partialorder %v283, 0.0
    %vm302 = vcmp.gt.f32.partialorder %v288, 0.0
    %vm303 = vcmp.gt.f32.partialorder %v293, 0.0
    %vm304 = vcmp.gt.f32.partialorder %v298, 0.0
    %v305 = vmul.f32 %v283, 0.2
    %v306 = vmul.f32 %v288, 0.2
    %v307 = vmul.f32 %v293, 0.2
    %v308 = vmul.f32 %v298, 0.2
    %v309 = vsel %vm301, %v283, %v305
    %v310 = vsel %vm302, %v288, %v306
    %v311 = vsel %vm303, %v293, %v307
    %v312 = vsel %vm304, %v298, %v308
    %s313 = scalar_lea.vmem %s2, 16
    %v314 = vld [vmem:[%s313] sm:$0xf]
    %v315 = vld [vmem:[%s313 + $0x4] sm:$0xf]
    %v316 = vld [vmem:[%s313 + $0x8] sm:$0xf]
    %v317 = vld [vmem:[%s313 + $0xc] sm:$0xf]
    %v318 = vunpack.c.l.bf16 %v314
    %v319 = vunpack.c.l.bf16 %v315
    %v320 = vunpack.c.l.bf16 %v316
    %v321 = vunpack.c.l.bf16 %v317
    %322 = vset.pattern.permute.xlu0 1
    %323 = vperm.xlu0 %322, %v179
    %v324 = vpop.permute.xlu0 %323
    %326 = vset.pattern.permute.xlu0 1
    %327 = vperm.xlu0 %326, %v180
    %v328 = vpop.permute.xlu0 %327
    %330 = vset.pattern.permute.xlu0 1
    %331 = vperm.xlu0 %330, %v181
    %v332 = vpop.permute.xlu0 %331
    %334 = vset.pattern.permute.xlu0 1
    %335 = vperm.xlu0 %334, %v182
    %v336 = vpop.permute.xlu0 %335
    %v339 = vsel %vm203, %v318, 0
    %v342 = vsel %vm203, %v319, 0
    %v345 = vsel %vm203, %v320, 0
    %v348 = vsel %vm203, %v321, 0
    %350 = vmatprep.subr.mxu0 0.0
    %351 = vmatpush1.msra.mxu0 %v309
    %352 = vmatprep.subr.mxu0 0.0
    %353 = vmatpush1.msra.mxu0 %v310
    %354 = vmatprep.subr.mxu0 0.0
    %355 = vmatpush1.msra.mxu0 %v311
    %356 = vmatprep.subr.mxu0 0.0
    %357 = vmatpush1.msra.mxu0 %v312
    %358 = vmatprep.subr.mxu0 0.0
    %359 = vmatpush1.msra.mxu0 0.0
    %360 = vmatprep.subr.mxu0 0.0
    %361 = vmatpush1.msra.mxu0 0.0
    %362 = vmatprep.subr.mxu0 0.0
    %363 = vmatpush1.msra.mxu0 0.0
    %364 = vmatprep.subr.mxu0 0.0
    %365 = vmatpush1.msra.mxu0 0.0
    %366 = vmatprep.subr.mxu0 0.0
    %367 = vmatpush1.msra.mxu0 0.0
    %368 = vmatprep.subr.mxu0 0.0
    %369 = vmatpush1.msra.mxu0 0.0
    %370 = vmatprep.subr.mxu0 0.0
    %371 = vmatpush1.msra.mxu0 0.0
    %372 = vmatprep.subr.mxu0 0.0
    %373 = vmatpush1.msra.mxu0 0.0
    %374 = vmatprep.subr.mxu0 0.0
    %375 = vmatpush1.msra.mxu0 0.0
    %376 = vmatprep.subr.mxu0 0.0
    %377 = vmatpush1.msra.mxu0 0.0
    %378 = vmatprep.subr.mxu0 0.0
    %379 = vmatpush1.msra.mxu0 0.0
    %380 = vmatprep.subr.mxu0 0.0
    %381 = vmatpush1.msra.mxu0 0.0
    %382 = vmatprep.subr.mxu0 0.0
    %383 = vmatpush1.msra.mxu0 0.0
    %384 = vmatprep.subr.mxu0 0.0
    %385 = vmatpush1.msra.mxu0 0.0
    %386 = vmatprep.subr.mxu0 0.0
    %387 = vmatpush1.msra.mxu0 0.0
    %388 = vmatprep.subr.mxu0 0.0
    %389 = vmatpush1.msra.mxu0 0.0
    %390 = vmatprep.subr.mxu0 0.0
    %391 = vmatpush1.msra.mxu0 0.0
    %392 = vmatprep.subr.mxu0 0.0
    %393 = vmatpush1.msra.mxu0 0.0
    %394 = vmatprep.subr.mxu0 0.0
    %395 = vmatpush1.msra.mxu0 0.0
    %396 = vmatprep.subr.mxu0 0.0
    %397 = vmatpush1.msra.mxu0 0.0
    %398 = vmatprep.subr.mxu0 0.0
    %399 = vmatpush1.msra.mxu0 0.0
    %400 = vmatprep.subr.mxu0 0.0
    %401 = vmatpush1.msra.mxu0 0.0
    %402 = vmatprep.subr.mxu0 0.0
    %403 = vmatpush1.msra.mxu0 0.0
    %404 = vmatprep.subr.mxu0 0.0
    %405 = vmatpush1.msra.mxu0 0.0
    %406 = vmatprep.subr.mxu0 0.0
    %407 = vmatpush1.msra.mxu0 0.0
    %408 = vmatprep.subr.mxu0 0.0
    %409 = vmatpush1.msra.mxu0 0.0
    %410 = vmatprep.subr.mxu0 0.0
    %411 = vmatpush1.msra.mxu0 0.0
    %412 = vmatprep.subr.mxu0 0.0
    %413 = vmatpush1.msra.mxu0 0.0
    %414 = vmatprep.mubr.f32.mxu0 0.0
    %415 = vmatmul.mubr.f32.gmra.mrb[0].mxu0 %v339
    %v416 = vpop.f32.mrb[0].mxu0
    %v417 = vadd.f32 %v324, %v416
    %v418 = vpop.f32.mrb[0].mxu0
    %419 = vmatprep.mubr.f32.mxu0 0.0
    %420 = vmatmul.mubr.f32.gmra.mrb[0].mxu0 %v342
    %v421 = vpop.f32.mrb[0].mxu0
    %v422 = vadd.f32 %v328, %v421
    %v423 = vpop.f32.mrb[0].mxu0
    %424 = vmatprep.mubr.f32.mxu0 0.0
    %425 = vmatmul.mubr.f32.gmra.mrb[0].mxu0 %v345
    %v426 = vpop.f32.mrb[0].mxu0
    %v427 = vadd.f32 %v332, %v426
    %v428 = vpop.f32.mrb[0].mxu0
    %429 = vmatprep.mubr.f32.mxu0 0.0
    %430 = vmatmul.mubr.f32.gmra.mrb[0].mxu0 %v348
    %v431 = vpop.f32.mrb[0].mxu0
    %v432 = vadd.f32 %v336, %v431
    %v433 = vpop.f32.mrb[0].mxu0
    %434 = vdwg.mxu0
    %vm435 = vcmp.gt.f32.partialorder %v417, 0.0
    %vm436 = vcmp.gt.f32.partialorder %v422, 0.0
    %vm437 = vcmp.gt.f32.partialorder %v427, 0.0
    %vm438 = vcmp.gt.f32.partialorder %v432, 0.0
    %v439 = vmul.f32 %v417, 0.2
    %v440 = vmul.f32 %v422, 0.2
    %v441 = vmul.f32 %v427, 0.2
    %v442 = vmul.f32 %v432, 0.2
    %v443 = vsel %vm435, %v417, %v439
    %v444 = vsel %vm436, %v422, %v440
    %v445 = vsel %vm437, %v427, %v441
    %v446 = vsel %vm438, %v432, %v442
    %s447 = scalar_lea.vmem %s2, 32
    %v448 = vld [vmem:[%s447] sm:$0xf]
    %v449 = vld [vmem:[%s447 + $0x4] sm:$0xf]
    %v450 = vld [vmem:[%s447 + $0x8] sm:$0xf]
    %v451 = vld [vmem:[%s447 + $0xc] sm:$0xf]
    %v452 = vunpack.c.l.bf16 %v448
    %v453 = vunpack.c.l.bf16 %v449
    %v454 = vunpack.c.l.bf16 %v450
    %v455 = vunpack.c.l.bf16 %v451
    %456 = vset.pattern.permute.xlu0 2
    %457 = vperm.xlu0 %456, %v179
    %v458 = vpop.permute.xlu0 %457
    %460 = vset.pattern.permute.xlu0 2
    %461 = vperm.xlu0 %460, %v180
    %v462 = vpop.permute.xlu0 %461
    %464 = vset.pattern.permute.xlu0 2
    %465 = vperm.xlu0 %464, %v181
    %v466 = vpop.permute.xlu0 %465
    %468 = vset.pattern.permute.xlu0 2
    %469 = vperm.xlu0 %468, %v182
    %v470 = vpop.permute.xlu0 %469
    %v473 = vsel %vm203, %v452, 0
    %v476 = vsel %vm203, %v453, 0
    %v479 = vsel %vm203, %v454, 0
    %v482 = vsel %vm203, %v455, 0
    %484 = vmatprep.subr.mxu0 0.0
    %485 = vmatpush1.msra.mxu0 %v443
    %486 = vmatprep.subr.mxu0 0.0
    %487 = vmatpush1.msra.mxu0 %v444
    %488 = vmatprep.subr.mxu0 0.0
    %489 = vmatpush1.msra.mxu0 %v445
    %490 = vmatprep.subr.mxu0 0.0
    %491 = vmatpush1.msra.mxu0 %v446
    %492 = vmatprep.subr.mxu0 0.0
    %493 = vmatpush1.msra.mxu0 0.0
    %494 = vmatprep.subr.mxu0 0.0
    %495 = vmatpush1.msra.mxu0 0.0
    %496 = vmatprep.subr.mxu0 0.0
    %497 = vmatpush1.msra.mxu0 0.0
    %498 = vmatprep.subr.mxu0 0.0
    %499 = vmatpush1.msra.mxu0 0.0
    %500 = vmatprep.subr.mxu0 0.0
    %501 = vmatpush1.msra.mxu0 0.0
    %502 = vmatprep.subr.mxu0 0.0
    %503 = vmatpush1.msra.mxu0 0.0
    %504 = vmatprep.subr.mxu0 0.0
    %505 = vmatpush1.msra.mxu0 0.0
    %506 = vmatprep.subr.mxu0 0.0
    %507 = vmatpush1.msra.mxu0 0.0
    %508 = vmatprep.subr.mxu0 0.0
    %509 = vmatpush1.msra.mxu0 0.0
    %510 = vmatprep.subr.mxu0 0.0
    %511 = vmatpush1.msra.mxu0 0.0
    %512 = vmatprep.subr.mxu0 0.0
    %513 = vmatpush1.msra.mxu0 0.0
    %514 = vmatprep.subr.mxu0 0.0
    %515 = vmatpush1.msra.mxu0 0.0
    %516 = vmatprep.subr.mxu0 0.0
    %517 = vmatpush1.msra.mxu0 0.0
    %518 = vmatprep.subr.mxu0 0.0
    %519 = vmatpush1.msra.mxu0 0.0
    %520 = vmatprep.subr.mxu0 0.0
    %521 = vmatpush1.msra.mxu0 0.0
    %522 = vmatprep.subr.mxu0 0.0
    %523 = vmatpush1.msra.mxu0 0.0
    %524 = vmatprep.subr.mxu0 0.0
    %525 = vmatpush1.msra.mxu0 0.0
    %526 = vmatprep.subr.mxu0 0.0
    %527 = vmatpush1.msra.mxu0 0.0
    %528 = vmatprep.subr.mxu0 0.0
    %529 = vmatpush1.msra.mxu0 0.0
    %530 = vmatprep.subr.mxu0 0.0
    %531 = vmatpush1.msra.mxu0 0.0
    %532 = vmatprep.subr.mxu0 0.0
    %533 = vmatpush1.msra.mxu0 0.0
    %534 = vmatprep.subr.mxu0 0.0
    %535 = vmatpush1.msra.mxu0 0.0
    %536 = vmatprep.subr.mxu0 0.0
    %537 = vmatpush1.msra.mxu0 0.0
    %538 = vmatprep.subr.mxu0 0.0
    %539 = vmatpush1.msra.mxu0 0.0
    %540 = vmatprep.subr.mxu0 0.0
    %541 = vmatpush1.msra.mxu0 0.0
    %542 = vmatprep.subr.mxu0 0.0
    %543 = vmatpush1.msra.mxu0 0.0
    %544 = vmatprep.subr.mxu0 0.0
    %545 = vmatpush1.msra.mxu0 0.0
    %546 = vmatprep.subr.mxu0 0.0
    %547 = vmatpush1.msra.mxu0 0.0
    %548 = vmatprep.mubr.f32.mxu0 0.0
    %549 = vmatmul.mubr.f32.gmra.mrb[0].mxu0 %v473
    %v550 = vpop.f32.mrb[0].mxu0
    %v551 = vadd.f32 %v458, %v550
    %v552 = vpop.f32.mrb[0].mxu0
    %553 = vmatprep.mubr.f32.mxu0 0.0
    %554 = vmatmul.mubr.f32.gmra.mrb[0].mxu0 %v476
    %v555 = vpop.f32.mrb[0].mxu0
    %v556 = vadd.f32 %v462, %v555
    %v557 = vpop.f32.mrb[0].mxu0
    %558 = vmatprep.mubr.f32.mxu0 0.0
    %559 = vmatmul.mubr.f32.gmra.mrb[0].mxu0 %v479
    %v560 = vpop.f32.mrb[0].mxu0
    %v561 = vadd.f32 %v466, %v560
    %v562 = vpop.f32.mrb[0].mxu0
    %563 = vmatprep.mubr.f32.mxu0 0.0
    %564 = vmatmul.mubr.f32.gmra.mrb[0].mxu0 %v482
    %v565 = vpop.f32.mrb[0].mxu0
    %v566 = vadd.f32 %v470, %v565
    %v567 = vpop.f32.mrb[0].mxu0
    %568 = vdwg.mxu0
    %vm569 = vcmp.gt.f32.partialorder %v551, 0.0
    %vm570 = vcmp.gt.f32.partialorder %v556, 0.0
    %vm571 = vcmp.gt.f32.partialorder %v561, 0.0
    %vm572 = vcmp.gt.f32.partialorder %v566, 0.0
    %v573 = vmul.f32 %v551, 0.2
    %v574 = vmul.f32 %v556, 0.2
    %v575 = vmul.f32 %v561, 0.2
    %v576 = vmul.f32 %v566, 0.2
    %v577 = vsel %vm569, %v551, %v573
    %v578 = vsel %vm570, %v556, %v574
    %v579 = vsel %vm571, %v561, %v575
    %v580 = vsel %vm572, %v566, %v576
    %v581 = vld [vmem:[%s3] sm:$0x1]
    %582 = vset.pattern.permute.xlu0 3
    %583 = vperm.xlu0 %582, %v179
    %v584 = vpop.permute.xlu0 %583
    %586 = vset.pattern.permute.xlu0 3
    %587 = vperm.xlu0 %586, %v180
    %v588 = vpop.permute.xlu0 %587
    %590 = vset.pattern.permute.xlu0 3
    %591 = vperm.xlu0 %590, %v181
    %v592 = vpop.permute.xlu0 %591
    %594 = vset.pattern.permute.xlu0 3
    %595 = vperm.xlu0 %594, %v182
    %v596 = vpop.permute.xlu0 %595
    %v598 = vadd.f32 %v584, %v153
    %v599 = vadd.f32 %v588, %v158
    %v600 = vadd.f32 %v592, %v163
    %v601 = vadd.f32 %v596, %v168
    %v602 = vmul.f32 %v577, %v598
    %v603 = vmul.f32 %v578, %v599
    %v604 = vmul.f32 %v579, %v600
    %v605 = vmul.f32 %v580, %v601
    %v606 = vadd.f32 %v602, %v603
    %v607 = vadd.f32 %v606, %v604
    %v608 = vadd.f32 %v607, %v605
    %v609 = vrot.slane %v608, 4
    %v610 = vadd.f32 %v608, %v609
    %v611 = vrot.slane %v610, 2
    %v612 = vadd.f32 %v610, %v611
    %v613 = vrot.slane %v612, 1
    %v614 = vadd.f32 %v612, %v613
    %616 = vset.pattern.permute.xlu0 4
    %617 = vperm.xlu0 %616, %v581
    %v618 = vpop.permute.xlu0 %617
    %v620 = vadd.f32 %v614, %v618
    %621 = vst [vmem:[#allocation5] sm:$0x1] %v620
    // Predicated region
    $region26: #{tpu_custom_call.1} parent=1 // pred_check
      _
    $region27: #{tpu_custom_call.1} parent=1 // pred_check_branch
      %623 = sbr.rel (0) target = $region29
    $region28: #{tpu_custom_call.1} parent=1 // pred_region
      %s625 = ssub.s32 16, 16
      %626 = vsyncadd [#allocation4], %s625
      %s628 = sshll.u32 [#allocation5], 4
      %s629 = int_to_ptr.vmem [resolvable:$true] %s628
      %631 = dma.vmem_to_hbm [thread:$0]  %s629, 16, %s5, [#allocation4]
    $region29: #{tpu_custom_call.1} parent=1 // pred_fallthru
      _
    // Predicated region
    $region30: #{tpu_custom_call.1} parent=1 // pred_check
      _
    $region31: #{tpu_custom_call.1} parent=1 // pred_check_branch
      %633 = sbr.rel (0) target = $region33
    $region32: #{tpu_custom_call.1} parent=1 // pred_region
      %634 = dma.done [#allocation4], 16
    $region33: #{tpu_custom_call.1} parent=1 // pred_fallthru
      _
    %635 = vsyncpa [#allocation3], 1
    %636 = vsyncpa [#allocation4], 1

</llo_original>
